<compile_context>
chip_gen: v6e
topology: v6e:2x2x1
jax: 0.10.0
libtpu: 0.0.40
codegen_flags: <defaults>
</compile_context>

<pallas_src>
import math
import numpy as np
import jax
import jax.numpy as jnp
from jax.experimental import pallas as pl
from jax.experimental.pallas import tpu as pltpu


# ----------------------------------------------------------------------------
# Kernel 1: fused (graph proj + eval data_bn + C->D proj) + mean-pool
# ----------------------------------------------------------------------------
def fused_proj_pool(x_m, w_comb, *, V, D, t_block=None):
    """x_m: (M, N, T, VCpad) bf16;  w_comb: (M, VCpad, V*D) bf16  ->  (N, D) f32."""
    M, N, T, VCpad = x_m.shape
    VD = V * D
    assert w_comb.shape == (M, VCpad, VD), (w_comb.shape, (M, VCpad, VD))
    assert T % 8 == 0, "frame count must be a multiple of 8 (sublane tiling)"
    if t_block is None:
        # Bigger tiles amortize the ~0.35us/step overhead; the cap keeps the
        # f32 (t_block, V*D) matmul-result tile well inside v7x's 64 MiB VMEM.
        t_block = T if T <= 64 else 64
    assert T % t_block == 0 and t_block % 8 == 0, (T, t_block)
    n_tb = T // t_block
    n_grp = t_block // 8
    inv_count = 1.0 / float(M * T * V)

    def kernel(x_ref, w_ref, o_ref, acc_ref):
        m, tb = pl.program_id(1), pl.program_id(2)

        @pl.when((m == 0) & (tb == 0))
        def _init():
            acc_ref[...] = jnp.zeros_like(acc_ref)

        # bf16 x bf16 -> f32 on the MXU.  The (t_block, V*D) token tile never
        # goes to HBM -- it is reduced into the pooled accumulator right here.
        y = jnp.dot(x_ref[0, 0], w_ref[0], preferred_element_type=jnp.float32)

        # Sublane-group partial sums: pure lane-parallel VPU adds in the hot
        # loop; no cross-sublane / cross-lane data movement per step.
        part = y[0:8, :]
        for g in range(1, n_grp):
            part = part + y[g * 8:(g + 1) * 8, :]
        acc_ref[...] += part                                    # (8, V*D) f32

        @pl.when((m == pl.num_programs(1) - 1) & (tb == pl.num_programs(2) - 1))
        def _finalize():
            acc = acc_ref[...]                                  # (8, V*D)
            s = acc[:, 0:D]
            for v in range(1, V):                               # lane-group adds, once/sample
                s = s + acc[:, v * D:(v + 1) * D]               # (8, D)
            o_ref[0] = jnp.sum(s, axis=0, keepdims=True) * inv_count  # one XLU reduce

    out = pl.pallas_call(
        kernel,
        out_shape=jax.ShapeDtypeStruct((N, 1, D), jnp.float32),
        grid=(N, M, n_tb),
        in_specs=[
            pl.BlockSpec((1, 1, t_block, VCpad), lambda n, m, tb: (m, n, tb, 0)),
            # w block index is constant over tb -> re-fetched only when m changes.
            pl.BlockSpec((1, VCpad, VD), lambda n, m, tb: (m, 0, 0)),
        ],
        out_specs=pl.BlockSpec((1, 1, D), lambda n, m, tb: (n, 0, 0)),
        scratch_shapes=[pltpu.VMEM((8, VD), jnp.float32)],
        compiler_params=pltpu.CompilerParams(
            # n is independent (sharded across v7x's 2 TCs); m / t-blocks are a
            # reduction into the resident accumulator, hence "arbitrary".
            dimension_semantics=("parallel", "arbitrary", "arbitrary")),
        cost_estimate=pl.CostEstimate(
            flops=2 * N * M * T * VCpad * VD + N * M * T * VD,
            transcendentals=0,
            bytes_accessed=2 * (M * N * T * VCpad) + 2 * (N * M * VCpad * VD)
                           + 4 * N * D),
    )(x_m, w_comb)
    return out.reshape(N, D)


# ----------------------------------------------------------------------------
# Kernel 2: batched classifier on the pooled features
# ----------------------------------------------------------------------------
def _fc_kernel(p_ref, w_ref, b_ref, o_ref):
    o_ref[...] = jnp.dot(p_ref[...], w_ref[...],
                         preferred_element_type=jnp.float32) + b_ref[...]


def classify(pooled, fc_w_pad, fc_b_pad):
    # (Npad, D) @ (D, Kpad): all samples share one sublane-aligned MXU pass.
    N, D = pooled.shape
    Kpad = fc_w_pad.shape[-1]
    Npad = ((N + 7) // 8) * 8
    p = jnp.zeros((Npad, D), jnp.float32).at[:N].set(pooled)
    out = pl.pallas_call(
        _fc_kernel,
        out_shape=jax.ShapeDtypeStruct((Npad, Kpad), jnp.float32),
    )(p, fc_w_pad, fc_b_pad)
    return out[:N]


# ------------------------- Parameters (deterministic) -----------------------
def make_params(key, *, V, C, D, num_class, M, k=1):
    hp = jax.lax.Precision.HIGHEST
    # Synthetic deterministic graph: chain skeleton, outward edge i -> i-1.
    A_outward = np.zeros((V, V), np.float32)
    for i in range(1, V):
        A_outward[i, i - 1] = 1.0
    A_vec = jnp.asarray(np.eye(V, dtype=np.float32)
                        - np.linalg.matrix_power(A_outward, k))

    # data_bn: bn_init(m, 1) -> gamma=1, beta=0; eval mode with running stats 0/1.
    eps = 1e-5
    Cch = M * V * C
    gamma = jnp.ones((Cch,), jnp.float32)
    beta = jnp.zeros((Cch,), jnp.float32)
    r_mean = jnp.zeros((Cch,), jnp.float32)
    r_var = jnp.ones((Cch,), jnp.float32)
    scale = gamma / jnp.sqrt(r_var + eps)
    bn_scale = scale.reshape(M, V, C)                     # channel order is (m v c)
    bn_shift = (beta - r_mean * scale).reshape(M, V, C)

    k1, k2 = jax.random.split(key)
    proj_w = 0.02 * jax.random.normal(k1, (C, D), jnp.float32)
    # fc: weight ~ N(0, sqrt(2/num_class)), bias = 0 (as in the module __init__).
    fc_w = math.sqrt(2.0 / num_class) * jax.random.normal(k2, (D, num_class), jnp.float32)
    fc_b = jnp.zeros((num_class,), jnp.float32)

    # Fold graph projection + eval-BN affine + channel projection (per person m):
    # w_comb[m, (v_in, c), (v_out, d)] = A[v_out, v_in] * bn_scale[m, v_out, c] * W[c, d]
    w_comb = jnp.einsum('ab,mac,cd->mbcad', A_vec, bn_scale, proj_w,
                        precision=hp).reshape(M, V * C, V * D)
    b_comb = jnp.einsum('mac,cd->mad', bn_shift, proj_w, precision=hp)   # (M, V, D)

    # Pad contraction dim V*C to a multiple of 8 (sublane-aligned lhs rows) and
    # cast the MXU operand to bf16 (f32 accumulation happens inside the kernel).
    VC = V * C
    VCpad = ((VC + 7) // 8) * 8
    w_comb_bf16 = (jnp.zeros((M, VCpad, V * D), jnp.float32)
                   .at[:, :VC, :].set(w_comb)).astype(jnp.bfloat16)

    # The (linear, eval-mode) bias commutes with mean-pool + fc, so fold it into
    # the fc bias exactly: logits = mean(z) @ fc_w + (mean_{m,v} b_comb @ fc_w + fc_b).
    pooled_bias = jnp.mean(b_comb, axis=(0, 1))           # (D,)
    fc_b_eff = fc_b + jnp.dot(pooled_bias, fc_w, precision=hp)

    # Lane-dense classifier head (Kpad = next multiple of 128).
    Kpad = ((num_class + 127) // 128) * 128
    fc_w_pad = jnp.zeros((D, Kpad), jnp.float32).at[:, :num_class].set(fc_w)
    fc_b_pad = jnp.zeros((1, Kpad), jnp.float32).at[0, :num_class].set(fc_b_eff)

    return dict(A_vector=A_vec, bn_scale=bn_scale, bn_shift=bn_shift,
                proj_w=proj_w, fc_w=fc_w, fc_b=fc_b,
                w_comb_bf16=w_comb_bf16, fc_w_pad=fc_w_pad, fc_b_pad=fc_b_pad,
                num_class=num_class)


# --------------------------------- Forward ----------------------------------
def _prep_tokens(x, VCpad):
    # Single wrapper layout change: (N, C, T, V, M) -> (M, N, T, V*C), zero-pad
    # the channel dim to VCpad, cast the MXU operand to bf16.
    N, C, T, V, M = x.shape
    x_m = jnp.transpose(x, (4, 0, 2, 3, 1)).reshape(M, N, T, V * C)
    if VCpad > V * C:
        x_m = jnp.pad(x_m, ((0, 0), (0, 0), (0, 0), (0, VCpad - V * C)))
    return x_m.astype(jnp.bfloat16)


def hybridformer_forward(x, params, *, t_block=None):
    # x: (N, C, T, V, M) -- same axis convention as the PyTorch module input.
    N, C, T, V, M = x.shape
    w = params["w_comb_bf16"]                  # (M, VCpad, V*D)
    VCpad, VD = w.shape[1], w.shape[2]
    D = VD // V
    num_class = params["num_class"]

    x_m = _prep_tokens(x, VCpad)

    # Fused: A_vector graph projection + data_bn (eval affine) + C->D projection
    # + (m, t, v) mean-pool; the token tensor never round-trips through HBM.
    pooled = fused_proj_pool(x_m, w, V=V, D=D, t_block=t_block)    # (N, D) f32

    # TODO(synk): TCN_ViT_unit / unit_coupled / unit_tcn class definitions are
    # not provided in the reference source; the layer-stack stand-in is the
    # single fused C->D projection above.  When real layers are added, the
    # pooling fusion moves to the last layer's kernel instead.

    logits = classify(pooled, params["fc_w_pad"], params["fc_b_pad"])  # (N, Kpad)
    return logits[:, :num_class]


# ------------------------- Plain-JAX reference checks ------------------------
def _reference_forward_f32(x, A, bn_scale, bn_shift, W, fc_w, fc_b):
    N, C, T, V, M = x.shape
    hp = jax.lax.Precision.HIGHEST
    xb = jnp.transpose(x, (0, 4, 2, 3, 1)).reshape(N * M * T, V, C)
    y = jnp.einsum('ab,rbc->rac', A, xb, precision=hp).reshape(N, M, T, V, C)
    y = y * bn_scale[None, :, None] + bn_shift[None, :, None]
    z = jnp.einsum('nmtvc,cd->nmtvd', y, W, precision=hp)
    pooled = z.mean(axis=(1, 2, 3))                        # (N, D)
    return jnp.dot(pooled, fc_w, precision=hp) + fc_b


def _reference_matched(x_m_bf16, w_comb_bf16, fc_w_pad, fc_b_pad, *, V, D):
    # Same folded-bf16 math as the Pallas path (tight plumbing check).
    M, N, T, _ = x_m_bf16.shape
    z = jnp.einsum('mntk,mkq->mntq', x_m_bf16, w_comb_bf16,
                   preferred_element_type=jnp.float32)     # (M, N, T, V*D) f32
    pooled = z.reshape(M, N, T, V, D).mean(axis=(0, 2, 3))  # (N, D)
    return jnp.dot(pooled, fc_w_pad,
                   precision=jax.lax.Precision.HIGHEST) + fc_b_pad[0]


if __name__ == "__main__":
    N, C, T, V, M = 2, 3, 8, 20, 2     # batch, in_channels, frames, joints, persons
    D = 128                            # stand-in dims[-1]; lane-dense head width
    num_class = 60

    key = jax.random.PRNGKey(0)
    kx, kp = jax.random.split(key)
    x = jax.random.normal(kx, (N, C, T, V, M), jnp.float32)
    params = make_params(kp, V=V, C=C, D=D, num_class=num_class, M=M, k=1)

    out = jax.block_until_ready(hybridformer_forward(x, params))
    assert out.shape == (N, num_class), out.shape
    assert bool(jnp.all(jnp.isfinite(out)))

    # Tight check: identical folded-bf16 math in plain JAX (catches plumbing bugs).
    VCpad = params["w_comb_bf16"].shape[1]
    x_m = _prep_tokens(x, VCpad)
    ref_m = _reference_matched(x_m, params["w_comb_bf16"], params["fc_w_pad"],
                               params["fc_b_pad"], V=V, D=D)[:, :num_class]
    assert bool(jnp.allclose(out, ref_m, rtol=1e-3, atol=1e-4)), \
        float(jnp.max(jnp.abs(out - ref_m)))

    # Loose check: un-folded f32 reference (tolerance covers bf16 operand rounding).
    ref = _reference_forward_f32(x, params["A_vector"], params["bn_scale"],
                                 params["bn_shift"], params["proj_w"],
                                 params["fc_w"], params["fc_b"])
    assert bool(jnp.allclose(out, ref, rtol=5e-2, atol=1e-2)), \
        float(jnp.max(jnp.abs(out - ref)))

    print("KERNEL_OK")
</pallas_src>

<mosaic_0001>
module attributes {stable_mosaic.version = 11 : i64} {
  func.func @kernel(%arg0: i32, %arg1: i32, %arg2: i32, %arg3: memref<1x1x8x64xbf16, #tpu.memory_space<vmem>>, %arg4: memref<1x64x2560xbf16, #tpu.memory_space<vmem>>, %arg5: memref<1x1x128xf32, #tpu.memory_space<vmem>>, %arg6: memref<8x2560xf32, #tpu.memory_space<vmem>>) attributes {dimension_semantics = [#tpu.dimension_semantics<parallel>, #tpu.dimension_semantics<arbitrary>, #tpu.dimension_semantics<arbitrary>], iteration_bounds = array<i64: 2, 2, 1>, scalar_prefetch = 0 : i64, scratch_operands = 1 : i64, tpu.core_type = #tpu.core_type<tc>, window_params = [{transform_indices = @transform_0, window_bounds = array<i64: 1, 1, 8, 64>}, {transform_indices = @transform_1, window_bounds = array<i64: 1, 64, 2560>}, {transform_indices = @transform_2, window_bounds = array<i64: 1, 1, 128>}]} {
    %c0_i32 = arith.constant 0 : i32
    %0 = arith.cmpi eq, %arg1, %c0_i32 : i32
    %c0_i32_0 = arith.constant 0 : i32
    %1 = arith.cmpi eq, %arg2, %c0_i32_0 : i32
    %2 = arith.andi %0, %1 : i1
    %3 = arith.extui %2 : i1 to i32
    %c0_i32_1 = arith.constant 0 : i32
    %4 = arith.cmpi ne, %3, %c0_i32_1 : i32
    scf.if %4 {
      %cst_14 = arith.constant 0.000000e+00 : f32
      %18 = vector.broadcast %cst_14 : f32 to vector<8x2560xf32>
      %c0_15 = arith.constant 0 : index
      %c0_16 = arith.constant 0 : index
      %19 = vector.load %arg6[%c0_15, %c0_16] : memref<8x2560xf32, #tpu.memory_space<vmem>>, vector<8x2560xf32>
      tpu.vector_store %arg6[%c0_15, %c0_16], %18 {strides = array<i32>} : memref<8x2560xf32, #tpu.memory_space<vmem>>, vector<8x2560xf32>,
    } else {
    }
    %c0 = arith.constant 0 : index
    %c0_2 = arith.constant 0 : index
    %c0_3 = arith.constant 0 : index
    %c0_4 = arith.constant 0 : index
    %5 = vector.load %arg3[%c0, %c0_2, %c0_3, %c0_4] : memref<1x1x8x64xbf16, #tpu.memory_space<vmem>>, vector<1x1x8x64xbf16>
    %6 = vector.shape_cast %5 : vector<1x1x8x64xbf16> to vector<8x64xbf16>
    %c0_5 = arith.constant 0 : index
    %c0_6 = arith.constant 0 : index
    %c0_7 = arith.constant 0 : index
    %7 = vector.load %arg4[%c0_5, %c0_6, %c0_7] : memref<1x64x2560xbf16, #tpu.memory_space<vmem>>, vector<1x64x2560xbf16>
    %8 = vector.shape_cast %7 : vector<1x64x2560xbf16> to vector<64x2560xbf16>
    %cst = arith.constant dense<0.000000e+00> : vector<8x2560xf32>
    %9 = tpu.matmul %6, %8, %cst {dimension_numbers = #tpu.dot_dimension_numbers<[1], [0], [0], [1], [0, 0, 1, 1], [], []>} : vector<8x64xbf16>, vector<64x2560xbf16>, vector<8x2560xf32> -> vector<8x2560xf32>
    %c0_8 = arith.constant 0 : index
    %c0_9 = arith.constant 0 : index
    %10 = vector.load %arg6[%c0_8, %c0_9] : memref<8x2560xf32, #tpu.memory_space<vmem>>, vector<8x2560xf32>
    %11 = arith.addf %10, %9 : vector<8x2560xf32>
    %c0_10 = arith.constant 0 : index
    %c0_11 = arith.constant 0 : index
    %12 = vector.load %arg6[%c0_10, %c0_11] : memref<8x2560xf32, #tpu.memory_space<vmem>>, vector<8x2560xf32>
    tpu.vector_store %arg6[%c0_10, %c0_11], %11 {strides = array<i32>} : memref<8x2560xf32, #tpu.memory_space<vmem>>, vector<8x2560xf32>,
    %c1_i32 = arith.constant 1 : i32
    %13 = arith.cmpi eq, %arg1, %c1_i32 : i32
    %c0_i32_12 = arith.constant 0 : i32
    %14 = arith.cmpi eq, %arg2, %c0_i32_12 : i32
    %15 = arith.andi %13, %14 : i1
    %16 = arith.extui %15 : i1 to i32
    %c0_i32_13 = arith.constant 0 : i32
    %17 = arith.cmpi ne, %16, %c0_i32_13 : i32
    scf.if %17 {
      %c0_14 = arith.constant 0 : index
      %c0_15 = arith.constant 0 : index
      %18 = vector.load %arg6[%c0_14, %c0_15] : memref<8x2560xf32, #tpu.memory_space<vmem>>, vector<8x2560xf32>
      %19 = vector.extract_strided_slice %18 {offsets = [0, 0], sizes = [8, 128], strides = [1, 1]} : vector<8x2560xf32> to vector<8x128xf32>
      %20 = vector.extract_strided_slice %18 {offsets = [0, 128], sizes = [8, 128], strides = [1, 1]} : vector<8x2560xf32> to vector<8x128xf32>
      %21 = arith.addf %19, %20 : vector<8x128xf32>
      %22 = vector.extract_strided_slice %18 {offsets = [0, 256], sizes = [8, 128], strides = [1, 1]} : vector<8x2560xf32> to vector<8x128xf32>
      %23 = arith.addf %21, %22 : vector<8x128xf32>
      %24 = vector.extract_strided_slice %18 {offsets = [0, 384], sizes = [8, 128], strides = [1, 1]} : vector<8x2560xf32> to vector<8x128xf32>
      %25 = arith.addf %23, %24 : vector<8x128xf32>
      %26 = vector.extract_strided_slice %18 {offsets = [0, 512], sizes = [8, 128], strides = [1, 1]} : vector<8x2560xf32> to vector<8x128xf32>
      %27 = arith.addf %25, %26 : vector<8x128xf32>
      %28 = vector.extract_strided_slice %18 {offsets = [0, 640], sizes = [8, 128], strides = [1, 1]} : vector<8x2560xf32> to vector<8x128xf32>
      %29 = arith.addf %27, %28 : vector<8x128xf32>
      %30 = vector.extract_strided_slice %18 {offsets = [0, 768], sizes = [8, 128], strides = [1, 1]} : vector<8x2560xf32> to vector<8x128xf32>
      %31 = arith.addf %29, %30 : vector<8x128xf32>
      %32 = vector.extract_strided_slice %18 {offsets = [0, 896], sizes = [8, 128], strides = [1, 1]} : vector<8x2560xf32> to vector<8x128xf32>
      %33 = arith.addf %31, %32 : vector<8x128xf32>
      %34 = vector.extract_strided_slice %18 {offsets = [0, 1024], sizes = [8, 128], strides = [1, 1]} : vector<8x2560xf32> to vector<8x128xf32>
      %35 = arith.addf %33, %34 : vector<8x128xf32>
      %36 = vector.extract_strided_slice %18 {offsets = [0, 1152], sizes = [8, 128], strides = [1, 1]} : vector<8x2560xf32> to vector<8x128xf32>
      %37 = arith.addf %35, %36 : vector<8x128xf32>
      %38 = vector.extract_strided_slice %18 {offsets = [0, 1280], sizes = [8, 128], strides = [1, 1]} : vector<8x2560xf32> to vector<8x128xf32>
      %39 = arith.addf %37, %38 : vector<8x128xf32>
      %40 = vector.extract_strided_slice %18 {offsets = [0, 1408], sizes = [8, 128], strides = [1, 1]} : vector<8x2560xf32> to vector<8x128xf32>
      %41 = arith.addf %39, %40 : vector<8x128xf32>
      %42 = vector.extract_strided_slice %18 {offsets = [0, 1536], sizes = [8, 128], strides = [1, 1]} : vector<8x2560xf32> to vector<8x128xf32>
      %43 = arith.addf %41, %42 : vector<8x128xf32>
      %44 = vector.extract_strided_slice %18 {offsets = [0, 1664], sizes = [8, 128], strides = [1, 1]} : vector<8x2560xf32> to vector<8x128xf32>
      %45 = arith.addf %43, %44 : vector<8x128xf32>
      %46 = vector.extract_strided_slice %18 {offsets = [0, 1792], sizes = [8, 128], strides = [1, 1]} : vector<8x2560xf32> to vector<8x128xf32>
      %47 = arith.addf %45, %46 : vector<8x128xf32>
      %48 = vector.extract_strided_slice %18 {offsets = [0, 1920], sizes = [8, 128], strides = [1, 1]} : vector<8x2560xf32> to vector<8x128xf32>
      %49 = arith.addf %47, %48 : vector<8x128xf32>
      %50 = vector.extract_strided_slice %18 {offsets = [0, 2048], sizes = [8, 128], strides = [1, 1]} : vector<8x2560xf32> to vector<8x128xf32>
      %51 = arith.addf %49, %50 : vector<8x128xf32>
      %52 = vector.extract_strided_slice %18 {offsets = [0, 2176], sizes = [8, 128], strides = [1, 1]} : vector<8x2560xf32> to vector<8x128xf32>
      %53 = arith.addf %51, %52 : vector<8x128xf32>
      %54 = vector.extract_strided_slice %18 {offsets = [0, 2304], sizes = [8, 128], strides = [1, 1]} : vector<8x2560xf32> to vector<8x128xf32>
      %55 = arith.addf %53, %54 : vector<8x128xf32>
      %56 = vector.extract_strided_slice %18 {offsets = [0, 2432], sizes = [8, 128], strides = [1, 1]} : vector<8x2560xf32> to vector<8x128xf32>
      %57 = arith.addf %55, %56 : vector<8x128xf32>
      %cst_16 = arith.constant dense<0.000000e+00> : vector<128xf32>
      %58 = vector.multi_reduction <add>, %57, %cst_16 [0] : vector<8x128xf32> to vector<128xf32>
      %59 = vector.shape_cast %58 : vector<128xf32> to vector<1x128xf32>
      %cst_17 = arith.constant 3.125000e-03 : f32
      %60 = vector.broadcast %cst_17 : f32 to vector<1x128xf32>
      %61 = arith.mulf %59, %60 : vector<1x128xf32>
      %c0_18 = arith.constant 0 : index
      %c0_19 = arith.constant 0 : index
      %c0_20 = arith.constant 0 : index
      %62 = vector.load %arg5[%c0_18, %c0_19, %c0_20] : memref<1x1x128xf32, #tpu.memory_space<vmem>>, vector<1x1x128xf32>
      %63 = vector.shape_cast %62 : vector<1x1x128xf32> to vector<1x128xf32>
      %64 = vector.shape_cast %61 : vector<1x128xf32> to vector<1x1x128xf32>
      tpu.vector_store %arg5[%c0_18, %c0_19, %c0_20], %64 {strides = array<i32>} : memref<1x1x128xf32, #tpu.memory_space<vmem>>, vector<1x1x128xf32>,
    } else {
    }
    return
  }
  func.func @transform_0(%arg0: i32, %arg1: i32, %arg2: i32) -> (i32, i32, i32, i32) {
    %c0_i32 = arith.constant 0 : i32
    %c0_i32_0 = arith.constant 0 : i32
    return %arg1, %arg0, %arg2, %c0_i32 : i32, i32, i32, i32
  }
  func.func @transform_1(%arg0: i32, %arg1: i32, %arg2: i32) -> (i32, i32, i32) {
    %c0_i32 = arith.constant 0 : i32
    %c0_i32_0 = arith.constant 0 : i32
    %c0_i32_1 = arith.constant 0 : i32
    return %arg1, %c0_i32, %c0_i32_0 : i32, i32, i32
  }
  func.func @transform_2(%arg0: i32, %arg1: i32, %arg2: i32) -> (i32, i32, i32) {
    %c0_i32 = arith.constant 0 : i32
    %c0_i32_0 = arith.constant 0 : i32
    %c0_i32_1 = arith.constant 0 : i32
    return %arg0, %c0_i32, %c0_i32_0 : i32, i32, i32
  }
}

</mosaic_0001>

<llo_original>
// kernel: tpu_custom_call.1
$region0: #{tpu_custom_call.1}
  #allocation0 [shape = 'u32[]', space=smem, size = 0x4, offset = 0x4, fixed_abs, tag = 'smem constant byte address 0x4 - core index']
  #allocation1 [shape = 'u32[144,128]{1,0:T(1,128)}', space=vmem, size = 0x12000, scoped, tag = 'internal scratch']
  #allocation2 [shape = 'f32[8,2560]{1,0:T(8,128)}', space=vmem, size = 0x14000, scoped, tag = 'scratch operand']
  %s0 = inlined_call_operand.hbm [shape: bf16[2,2,8,64], index: 0, kind: input, shape index: {}]
  %s1 = inlined_call_operand.hbm [shape: bf16[2,64,2560], index: 1, kind: input, shape index: {}]
  %s2 = inlined_call_operand.hbm [shape: f32[2,1,128], index: 2, kind: output, shape index: {}]
  %s3 = sld [smem:[#allocation0]]
  $region57: #{tpu_custom_call.1} parent=0
    _
  %s5 = ssub.s32 1, %s3
  %s6 = scalar_select 0, %s5, %s3
  $region1: #{tpu_custom_call.1} parent=0
    #allocation3 [shape = 'u8[4096]{0}', space=vmem, size = 0x1000, scoped, tag = 'input window, operand 0']
    #allocation4 [shape = 's32[2]{0}', space=sflag, size = 0x8, scoped, tag = 'scoped memory for tpu_custom_call.1']
    #allocation5 [shape = 's32[2]{0}', space=sflag, size = 0x8, scoped, tag = 'scoped memory for tpu_custom_call.1']
    #allocation6 [shape = 'u8[655360]{0}', space=vmem, size = 0xa0000, scoped, tag = 'input window, operand 1']
    #allocation7 [shape = 's32[2]{0}', space=sflag, size = 0x8, scoped, tag = 'scoped memory for tpu_custom_call.1']
    #allocation8 [shape = 'u8[1024]{0}', space=vmem, size = 0x400, scoped, tag = 'output window, operand 0']
    %7 = vsyncpa [#allocation4], 0
    %s8 = scalar_lea.sflag [#allocation4], 1
    %9 = vsyncpa %s8, 0
    %10 = vsyncpa [#allocation7], 0
    %s11 = scalar_lea.sflag [#allocation7], 1
    %12 = vsyncpa %s11, 0
    %13 = vsyncpa [#allocation5], 0
    %s14 = scalar_lea.sflag [#allocation5], 1
    %15 = vsyncpa %s14, 0
    loop: start=0, step=1, limit=6
    $region2: #{tpu_custom_call.1} parent=1 // loop_pre_header
      _
    $region3: #{tpu_custom_call.1} parent=1 // loop_header
      %s17 = sphi 0, %s21
      %p18 = scmp.ge.s32.totalorder %s17, 6
      %s24 = sphi 0, %s43
      %s25 = sphi 0, %s39
      %s26 = sphi 0, %s35
      %s27 = sphi 0, %s24
      %s28 = sphi 0, %s25
      %s29 = sphi 0, %s26
      %s30 = sphi 0, %s27
      %s31 = sphi 0, %s28
      %s32 = sphi 0, %s29
      %s50 = sphi 0, %s52
      %s53 = sphi 0, %s50
      %s54 = sphi 0, %s53
      %s70 = sphi 0, %s54
      %s76 = sphi 0, %s78
      %s79 = sphi 0, %s76
      %s80 = sphi 0, %s79
      %s96 = sphi 0, %s80
      %s102 = sphi 0, %s104
      %s105 = sphi 0, %s102
      %s106 = sphi 0, %s105
      %s122 = sphi 0, %s106
    $region4: #{tpu_custom_call.1} parent=1 // loop_header_branch
      %20 = sbr.rel (%p18) target = $region8
    $region5: #{tpu_custom_call.1} parent=1 // loop_body
      %s22 = ssub.s32 %s17, 1
      %s23 = ssub.s32 %s17, 2
      %s33 = sadd.s32 1, %s26
      %p34 = scmp.ge.s32.totalorder %s33, 1
      %s35 = scalar_select %p34, 0, %s33
      %s36 = sadd.s32 1, %s25
      %s37 = scalar_select %p34, %s36, %s25
      %p38 = scmp.ge.s32.totalorder %s37, 2
      %s39 = scalar_select %p38, 0, %s37
      %s40 = sadd.s32 1, %s24
      %s41 = scalar_select %p38, %s40, %s24
      %p42 = scmp.ge.s32.totalorder %s41, 2
      %s43 = scalar_select %p42, 0, %s41
      %s44 = ssub.s32 %s25, %s39
      %s45 = ssub.s32 %s24, %s43
      %s46 = sor.u32 %s44, %s45
      %s47 = ssub.s32 %s26, %s35
      %s48 = sor.u32 %s46, %s47
      %p49 = scmp.eq.s32.totalorder %s48, 0
      %s51 = sadd.s32 %s50, 1
      %s52 = scalar_select %p49, %s50, %s51
      %p55 = pneg %p49
      %p56 = scmp.eq.s32.totalorder %s17, 3
      %p57 = por %p55, %p56
      %p58 = scmp.ne.s32.totalorder %s50, %s53
      %p59 = scmp.eq.s32.totalorder %s17, 0
      %p60 = por %p58, %p59
      %p61 = scmp.ne.s32.totalorder %s50, %s53
      %p62 = scmp.eq.s32.totalorder %s22, 3
      %p63 = por %p61, %p62
      %p64 = scmp.ne.s32.totalorder %s53, %s54
      %p65 = scmp.eq.s32.totalorder %s22, 0
      %p66 = por %p64, %p65
      %p67 = scmp.ne.s32.totalorder %s53, %s54
      %p68 = scmp.eq.s32.totalorder %s23, 3
      %p69 = por %p67, %p68
      %p71 = scmp.ne.s32.totalorder %s54, %s70
      %p72 = scmp.eq.s32.totalorder %s23, 0
      %p73 = por %p71, %p72
      %s74 = ssub.s32 %s25, %s39
      %p75 = scmp.eq.s32.totalorder %s74, 0
      %s77 = sadd.s32 %s76, 1
      %s78 = scalar_select %p75, %s76, %s77
      %p81 = pneg %p75
      %p82 = scmp.eq.s32.totalorder %s17, 3
      %p83 = por %p81, %p82
      %p84 = scmp.ne.s32.totalorder %s76, %s79
      %p85 = scmp.eq.s32.totalorder %s17, 0
      %p86 = por %p84, %p85
      %p87 = scmp.ne.s32.totalorder %s76, %s79
      %p88 = scmp.eq.s32.totalorder %s22, 3
      %p89 = por %p87, %p88
      %p90 = scmp.ne.s32.totalorder %s79, %s80
      %p91 = scmp.eq.s32.totalorder %s22, 0
      %p92 = por %p90, %p91
      %p93 = scmp.ne.s32.totalorder %s79, %s80
      %p94 = scmp.eq.s32.totalorder %s23, 3
      %p95 = por %p93, %p94
      %p97 = scmp.ne.s32.totalorder %s80, %s96
      %p98 = scmp.eq.s32.totalorder %s23, 0
      %p99 = por %p97, %p98
      %s100 = ssub.s32 %s24, %s43
      %p101 = scmp.eq.s32.totalorder %s100, 0
      %s103 = sadd.s32 %s102, 1
      %s104 = scalar_select %p101, %s102, %s103
      %p107 = pneg %p101
      %p108 = scmp.eq.s32.totalorder %s17, 3
      %p109 = por %p107, %p108
      %p110 = scmp.ne.s32.totalorder %s102, %s105
      %p111 = scmp.eq.s32.totalorder %s17, 0
      %p112 = por %p110, %p111
      %p113 = scmp.ne.s32.totalorder %s102, %s105
      %p114 = scmp.eq.s32.totalorder %s22, 3
      %p115 = por %p113, %p114
      %p116 = scmp.ne.s32.totalorder %s105, %s106
      %p117 = scmp.eq.s32.totalorder %s22, 0
      %p118 = por %p116, %p117
      %p119 = scmp.ne.s32.totalorder %s105, %s106
      %p120 = scmp.eq.s32.totalorder %s23, 3
      %p121 = por %p119, %p120
      %p123 = scmp.ne.s32.totalorder %s106, %s122
      %p124 = scmp.eq.s32.totalorder %s23, 0
      %p125 = por %p123, %p124
      %p126 = scmp.le.s32.totalorder 1, %s17
      %p127 = scmp.lt.s32.totalorder %s17, 5
      %p128 = pnand %p126, %p127
      %p129 = pneg %p128
      // Predicated region
      $region9: #{tpu_custom_call.1} parent=5 // pred_check
        _
      $region10: #{tpu_custom_call.1} parent=5 // pred_check_branch
        %131 = sbr.rel (%p128) target = $region12
      $region11: #{tpu_custom_call.1} parent=5 // pred_region
        %s132 = ssub.s32 %s17, 1
      $region12: #{tpu_custom_call.1} parent=5 // pred_fallthru
        _
      %p133 = scmp.lt.s32.totalorder %s17, 4
      // Predicated region
      $region13: #{tpu_custom_call.1} parent=5 // pred_check
        %p134 = pneg %p133
      $region14: #{tpu_custom_call.1} parent=5 // pred_check_branch
        %136 = sbr.rel (%p134) target = $region16
      $region15: #{tpu_custom_call.1} parent=5 // pred_region
        // Predicated region
        $region17: #{tpu_custom_call.1} parent=15 // pred_check
          %p137 = pneg %p60
        $region18: #{tpu_custom_call.1} parent=15 // pred_check_branch
          %139 = sbr.rel (%p137) target = $region20
        $region19: #{tpu_custom_call.1} parent=15 // pred_region
          %s140 = sand.u32 %s50, 1
          %s141 = scalar_lea.sflag [#allocation4], %s140
          %s142 = sand.u32 %s50, 1
          %s143 = smul.addr %s142, 4
          %s144 = scalar_lea.vmem [#allocation3], %s143
          %s146 = ssub.s32 64, 64
          %147 = vsyncadd %s141, %s146
          %s148 = sadd.s32 %s26, %s24
          %s149 = smul.addr %s25, 2
          %s150 = sadd.s32 %s148, %s149
          %s151 = smul.addr %s150, 64
          %s152 = scalar_lea.hbm %s0, %s151
          %s154 = sshll.u32 %s144, 4
          %s155 = int_to_ptr.vmem [resolvable:$true] %s154
          %157 = dma.hbm_to_vmem [thread:$0]  %s152, 64, %s155, %s141
        $region20: #{tpu_custom_call.1} parent=15 // pred_fallthru
          _
        // Predicated region
        $region21: #{tpu_custom_call.1} parent=15 // pred_check
          %p158 = pneg %p86
        $region22: #{tpu_custom_call.1} parent=15 // pred_check_branch
          %160 = sbr.rel (%p158) target = $region24
        $region23: #{tpu_custom_call.1} parent=15 // pred_region
          %s161 = sand.u32 %s76, 1
          %s162 = scalar_lea.sflag [#allocation7], %s161
          %s163 = sand.u32 %s76, 1
          %s164 = smul.addr %s163, 640
          %s165 = scalar_lea.vmem [#allocation6], %s164
          %s167 = ssub.s32 10240, 10240
          %168 = vsyncadd %s162, %s167
          %s169 = smul.addr %s25, 160
          %s170 = smul.addr %s169, 64
          %s171 = scalar_lea.hbm %s1, %s170
          %s172 = sshll.u32 %s165, 4
          %s173 = int_to_ptr.vmem [resolvable:$true] %s172
          %178 = dma.hbm_to_vmem [thread:$0]  %s171, 10240, %s173, %s162, 1280, 1280, 80
        $region24: #{tpu_custom_call.1} parent=15 // pred_fallthru
          _
      $region16: #{tpu_custom_call.1} parent=5 // pred_fallthru
        _
      %p179 = scmp.le.s32.totalorder 1, %s17
      %p180 = scmp.lt.s32.totalorder %s17, 5
      %p181 = pnand %p179, %p180
      %p182 = pneg %p181
      // Predicated region
      $region25: #{tpu_custom_call.1} parent=5 // pred_check
        _
      $region26: #{tpu_custom_call.1} parent=5 // pred_check_branch
        %184 = sbr.rel (%p181) target = $region28
      $region27: #{tpu_custom_call.1} parent=5 // pred_region
        %s185 = ssub.s32 %s17, 1
        %s186 = sand.u32 %s53, 1
        %s187 = scalar_lea.sflag [#allocation4], %s186
        %s188 = sand.u32 %s53, 1
        %s189 = smul.addr %s188, 4
        %s190 = scalar_lea.vmem [#allocation3], %s189
        // Predicated region
        $region29: #{tpu_custom_call.1} parent=27 // pred_check
          %p191 = pneg %p66
        $region30: #{tpu_custom_call.1} parent=27 // pred_check_branch
          %193 = sbr.rel (%p191) target = $region32
        $region31: #{tpu_custom_call.1} parent=27 // pred_region
          %194 = dma.done %s187, 64
        $region32: #{tpu_custom_call.1} parent=27 // pred_fallthru
          _
        %s195 = sand.u32 %s79, 1
        %s196 = scalar_lea.sflag [#allocation7], %s195
        %s197 = sand.u32 %s79, 1
        %s198 = smul.addr %s197, 640
        %s199 = scalar_lea.vmem [#allocation6], %s198
        // Predicated region
        $region33: #{tpu_custom_call.1} parent=27 // pred_check
          %p200 = pneg %p92
        $region34: #{tpu_custom_call.1} parent=27 // pred_check_branch
          %202 = sbr.rel (%p200) target = $region36
        $region35: #{tpu_custom_call.1} parent=27 // pred_region
          %203 = dma.done %s196, 10240
        $region36: #{tpu_custom_call.1} parent=27 // pred_fallthru
          _
        %s204 = sand.u32 %s53, 1
        %s205 = scalar_lea.sflag [#allocation4], %s204
        %s206 = sand.u32 %s53, 1
        %s207 = smul.addr %s206, 4
        %s208 = scalar_lea.vmem [#allocation3], %s207
        %p209 = pneg %p66
        %p210 = pneg %p63
        %s211 = sand.u32 %s79, 1
        %s212 = scalar_lea.sflag [#allocation7], %s211
        %s213 = sand.u32 %s79, 1
        %s214 = smul.addr %s213, 640
        %s215 = scalar_lea.vmem [#allocation6], %s214
        %p216 = pneg %p92
        %p217 = pneg %p89
        %p218 = pneg %p118
        %p219 = pneg %p115
        %s220 = sand.u32 %s105, 1
        %s221 = scalar_lea.sflag [#allocation5], %s220
        %s222 = sand.u32 %s105, 1
        %s223 = scalar_lea.vmem [#allocation8], %s222
        %p225 = scmp.eq.s32.totalorder %s28, 0
        %p226 = scmp.eq.s32.totalorder %s29, 0
        %p227 = pnand %p225, %p226
        %p228 = pneg %p227
        // Predicated region
        $region37: #{tpu_custom_call.1} parent=27 // pred_check
          _
        $region38: #{tpu_custom_call.1} parent=27 // pred_check_branch
          %230 = sbr.rel (%p227) target = $region40
        $region39: #{tpu_custom_call.1} parent=27 // pred_region
          %231 = vst [vmem:[#allocation2] sm:$0xff] 0.0
          %232 = vst [vmem:[#allocation2 + $0x8] sm:$0xff] 0.0
          %233 = vst [vmem:[#allocation2 + $0x10] sm:$0xff] 0.0
          %234 = vst [vmem:[#allocation2 + $0x18] sm:$0xff] 0.0
          %235 = vst [vmem:[#allocation2 + $0x20] sm:$0xff] 0.0
          %236 = vst [vmem:[#allocation2 + $0x28] sm:$0xff] 0.0
          %237 = vst [vmem:[#allocation2 + $0x30] sm:$0xff] 0.0
          %238 = vst [vmem:[#allocation2 + $0x38] sm:$0xff] 0.0
          %239 = vst [vmem:[#allocation2 + $0x40] sm:$0xff] 0.0
          %240 = vst [vmem:[#allocation2 + $0x48] sm:$0xff] 0.0
          %241 = vst [vmem:[#allocation2 + $0x50] sm:$0xff] 0.0
          %242 = vst [vmem:[#allocation2 + $0x58] sm:$0xff] 0.0
          %243 = vst [vmem:[#allocation2 + $0x60] sm:$0xff] 0.0
          %244 = vst [vmem:[#allocation2 + $0x68] sm:$0xff] 0.0
          %245 = vst [vmem:[#allocation2 + $0x70] sm:$0xff] 0.0
          %246 = vst [vmem:[#allocation2 + $0x78] sm:$0xff] 0.0
          %247 = vst [vmem:[#allocation2 + $0x80] sm:$0xff] 0.0
          %248 = vst [vmem:[#allocation2 + $0x88] sm:$0xff] 0.0
          %249 = vst [vmem:[#allocation2 + $0x90] sm:$0xff] 0.0
          %250 = vst [vmem:[#allocation2 + $0x98] sm:$0xff] 0.0
        $region40: #{tpu_custom_call.1} parent=27 // pred_fallthru
          _
        %v251 = vld [vmem:[%s190] sm:$0xf]
        %v252 = vld [vmem:[%s199] sm:$0xff]
        %v253 = vld [vmem:[%s199 + $0x8] sm:$0xff]
        %v254 = vld [vmem:[%s199 + $0x10] sm:$0xff]
        %v255 = vld [vmem:[%s199 + $0x18] sm:$0xff]
        %v256 = vld [vmem:[%s199 + $0x20] sm:$0xff]
        %v257 = vld [vmem:[%s199 + $0x28] sm:$0xff]
        %v258 = vld [vmem:[%s199 + $0x30] sm:$0xff]
        %v259 = vld [vmem:[%s199 + $0x38] sm:$0xff]
        %v260 = vld [vmem:[%s199 + $0x40] sm:$0xff]
        %v261 = vld [vmem:[%s199 + $0x48] sm:$0xff]
        %v262 = vld [vmem:[%s199 + $0x50] sm:$0xff]
        %v263 = vld [vmem:[%s199 + $0x58] sm:$0xff]
        %v264 = vld [vmem:[%s199 + $0x60] sm:$0xff]
        %v265 = vld [vmem:[%s199 + $0x68] sm:$0xff]
        %v266 = vld [vmem:[%s199 + $0x70] sm:$0xff]
        %v267 = vld [vmem:[%s199 + $0x78] sm:$0xff]
        %v268 = vld [vmem:[%s199 + $0x80] sm:$0xff]
        %v269 = vld [vmem:[%s199 + $0x88] sm:$0xff]
        %v270 = vld [vmem:[%s199 + $0x90] sm:$0xff]
        %v271 = vld [vmem:[%s199 + $0x98] sm:$0xff]
        %v272 = vld [vmem:[%s199 + $0xa0] sm:$0xff]
        %v273 = vld [vmem:[%s199 + $0xa8] sm:$0xff]
        %v274 = vld [vmem:[%s199 + $0xb0] sm:$0xff]
        %v275 = vld [vmem:[%s199 + $0xb8] sm:$0xff]
        %v276 = vld [vmem:[%s199 + $0xc0] sm:$0xff]
        %v277 = vld [vmem:[%s199 + $0xc8] sm:$0xff]
        %v278 = vld [vmem:[%s199 + $0xd0] sm:$0xff]
        %v279 = vld [vmem:[%s199 + $0xd8] sm:$0xff]
        %v280 = vld [vmem:[%s199 + $0xe0] sm:$0xff]
        %v281 = vld [vmem:[%s199 + $0xe8] sm:$0xff]
        %v282 = vld [vmem:[%s199 + $0xf0] sm:$0xff]
        %v283 = vld [vmem:[%s199 + $0xf8] sm:$0xff]
        %v284 = vld [vmem:[%s199 + $0x100] sm:$0xff]
        %v285 = vld [vmem:[%s199 + $0x108] sm:$0xff]
        %v286 = vld [vmem:[%s199 + $0x110] sm:$0xff]
        %v287 = vld [vmem:[%s199 + $0x118] sm:$0xff]
        %v288 = vld [vmem:[%s199 + $0x120] sm:$0xff]
        %v289 = vld [vmem:[%s199 + $0x128] sm:$0xff]
        %v290 = vld [vmem:[%s199 + $0x130] sm:$0xff]
        %v291 = vld [vmem:[%s199 + $0x138] sm:$0xff]
        %v292 = vld [vmem:[%s199 + $0x140] sm:$0xff]
        %v293 = vld [vmem:[%s199 + $0x148] sm:$0xff]
        %v294 = vld [vmem:[%s199 + $0x150] sm:$0xff]
        %v295 = vld [vmem:[%s199 + $0x158] sm:$0xff]
        %v296 = vld [vmem:[%s199 + $0x160] sm:$0xff]
        %v297 = vld [vmem:[%s199 + $0x168] sm:$0xff]
        %v298 = vld [vmem:[%s199 + $0x170] sm:$0xff]
        %v299 = vld [vmem:[%s199 + $0x178] sm:$0xff]
        %v300 = vld [vmem:[%s199 + $0x180] sm:$0xff]
        %v301 = vld [vmem:[%s199 + $0x188] sm:$0xff]
        %v302 = vld [vmem:[%s199 + $0x190] sm:$0xff]
        %v303 = vld [vmem:[%s199 + $0x198] sm:$0xff]
        %v304 = vld [vmem:[%s199 + $0x1a0] sm:$0xff]
        %v305 = vld [vmem:[%s199 + $0x1a8] sm:$0xff]
        %v306 = vld [vmem:[%s199 + $0x1b0] sm:$0xff]
        %v307 = vld [vmem:[%s199 + $0x1b8] sm:$0xff]
        %v308 = vld [vmem:[%s199 + $0x1c0] sm:$0xff]
        %v309 = vld [vmem:[%s199 + $0x1c8] sm:$0xff]
        %v310 = vld [vmem:[%s199 + $0x1d0] sm:$0xff]
        %v311 = vld [vmem:[%s199 + $0x1d8] sm:$0xff]
        %v312 = vld [vmem:[%s199 + $0x1e0] sm:$0xff]
        %v313 = vld [vmem:[%s199 + $0x1e8] sm:$0xff]
        %v314 = vld [vmem:[%s199 + $0x1f0] sm:$0xff]
        %v315 = vld [vmem:[%s199 + $0x1f8] sm:$0xff]
        %v316 = vld [vmem:[%s199 + $0x200] sm:$0xff]
        %v317 = vld [vmem:[%s199 + $0x208] sm:$0xff]
        %v318 = vld [vmem:[%s199 + $0x210] sm:$0xff]
        %v319 = vld [vmem:[%s199 + $0x218] sm:$0xff]
        %v320 = vld [vmem:[%s199 + $0x220] sm:$0xff]
        %v321 = vld [vmem:[%s199 + $0x228] sm:$0xff]
        %v322 = vld [vmem:[%s199 + $0x230] sm:$0xff]
        %v323 = vld [vmem:[%s199 + $0x238] sm:$0xff]
        %v324 = vld [vmem:[%s199 + $0x240] sm:$0xff]
        %v325 = vld [vmem:[%s199 + $0x248] sm:$0xff]
        %v326 = vld [vmem:[%s199 + $0x250] sm:$0xff]
        %v327 = vld [vmem:[%s199 + $0x258] sm:$0xff]
        %v328 = vld [vmem:[%s199 + $0x260] sm:$0xff]
        %v329 = vld [vmem:[%s199 + $0x268] sm:$0xff]
        %v330 = vld [vmem:[%s199 + $0x270] sm:$0xff]
        %v331 = vld [vmem:[%s199 + $0x278] sm:$0xff]
        %v412 = vunpack.c.l.b16 %v252
        %v413 = vunpack.c.h.b16 %v252
        %v414 = vunpack.c.l.b16 %v253
        %v415 = vunpack.c.h.b16 %v253
        %v416 = vunpack.c.l.b16 %v254
        %v417 = vunpack.c.h.b16 %v254
        %v418 = vunpack.c.l.b16 %v255
        %v419 = vunpack.c.h.b16 %v255
        %v420 = vunpack.c.l.b16 %v256
        %v421 = vunpack.c.h.b16 %v256
        %v422 = vunpack.c.l.b16 %v257
        %v423 = vunpack.c.h.b16 %v257
        %v424 = vunpack.c.l.b16 %v258
        %v425 = vunpack.c.h.b16 %v258
        %v426 = vunpack.c.l.b16 %v259
        %v427 = vunpack.c.h.b16 %v259
        %v428 = vunpack.c.l.b16 %v260
        %v429 = vunpack.c.h.b16 %v260
        %v430 = vunpack.c.l.b16 %v261
        %v431 = vunpack.c.h.b16 %v261
        %v432 = vunpack.c.l.b16 %v262
        %v433 = vunpack.c.h.b16 %v262
        %v434 = vunpack.c.l.b16 %v263
        %v435 = vunpack.c.h.b16 %v263
        %v436 = vunpack.c.l.b16 %v264
        %v437 = vunpack.c.h.b16 %v264
        %v438 = vunpack.c.l.b16 %v265
        %v439 = vunpack.c.h.b16 %v265
        %v440 = vunpack.c.l.b16 %v266
        %v441 = vunpack.c.h.b16 %v266
        %v442 = vunpack.c.l.b16 %v267
        %v443 = vunpack.c.h.b16 %v267
        %v444 = vunpack.c.l.b16 %v268
        %v445 = vunpack.c.h.b16 %v268
        %v446 = vunpack.c.l.b16 %v269
        %v447 = vunpack.c.h.b16 %v269
        %v448 = vunpack.c.l.b16 %v270
        %v449 = vunpack.c.h.b16 %v270
        %v450 = vunpack.c.l.b16 %v271
        %v451 = vunpack.c.h.b16 %v271
        %v452 = vunpack.c.l.b16 %v272
        %v453 = vunpack.c.h.b16 %v272
        %v454 = vunpack.c.l.b16 %v273
        %v455 = vunpack.c.h.b16 %v273
        %v456 = vunpack.c.l.b16 %v274
        %v457 = vunpack.c.h.b16 %v274
        %v458 = vunpack.c.l.b16 %v275
        %v459 = vunpack.c.h.b16 %v275
        %v460 = vunpack.c.l.b16 %v276
        %v461 = vunpack.c.h.b16 %v276
        %v462 = vunpack.c.l.b16 %v277
        %v463 = vunpack.c.h.b16 %v277
        %v464 = vunpack.c.l.b16 %v278
        %v465 = vunpack.c.h.b16 %v278
        %v466 = vunpack.c.l.b16 %v279
        %v467 = vunpack.c.h.b16 %v279
        %v468 = vunpack.c.l.b16 %v280
        %v469 = vunpack.c.h.b16 %v280
        %v470 = vunpack.c.l.b16 %v281
        %v471 = vunpack.c.h.b16 %v281
        %v472 = vunpack.c.l.b16 %v282
        %v473 = vunpack.c.h.b16 %v282
        %v474 = vunpack.c.l.b16 %v283
        %v475 = vunpack.c.h.b16 %v283
        %v476 = vunpack.c.l.b16 %v284
        %v477 = vunpack.c.h.b16 %v284
        %v478 = vunpack.c.l.b16 %v285
        %v479 = vunpack.c.h.b16 %v285
        %v480 = vunpack.c.l.b16 %v286
        %v481 = vunpack.c.h.b16 %v286
        %v482 = vunpack.c.l.b16 %v287
        %v483 = vunpack.c.h.b16 %v287
        %v484 = vunpack.c.l.b16 %v288
        %v485 = vunpack.c.h.b16 %v288
        %v486 = vunpack.c.l.b16 %v289
        %v487 = vunpack.c.h.b16 %v289
        %v488 = vunpack.c.l.b16 %v290
        %v489 = vunpack.c.h.b16 %v290
        %v490 = vunpack.c.l.b16 %v291
        %v491 = vunpack.c.h.b16 %v291
        %v492 = vunpack.c.l.b16 %v292
        %v493 = vunpack.c.h.b16 %v292
        %v494 = vunpack.c.l.b16 %v293
        %v495 = vunpack.c.h.b16 %v293
        %v496 = vunpack.c.l.b16 %v294
        %v497 = vunpack.c.h.b16 %v294
        %v498 = vunpack.c.l.b16 %v295
        %v499 = vunpack.c.h.b16 %v295
        %v500 = vunpack.c.l.b16 %v296
        %v501 = vunpack.c.h.b16 %v296
        %v502 = vunpack.c.l.b16 %v297
        %v503 = vunpack.c.h.b16 %v297
        %v504 = vunpack.c.l.b16 %v298
        %v505 = vunpack.c.h.b16 %v298
        %v506 = vunpack.c.l.b16 %v299
        %v507 = vunpack.c.h.b16 %v299
        %v508 = vunpack.c.l.b16 %v300
        %v509 = vunpack.c.h.b16 %v300
        %v510 = vunpack.c.l.b16 %v301
        %v511 = vunpack.c.h.b16 %v301
        %v512 = vunpack.c.l.b16 %v302
        %v513 = vunpack.c.h.b16 %v302
        %v514 = vunpack.c.l.b16 %v303
        %v515 = vunpack.c.h.b16 %v303
        %v516 = vunpack.c.l.b16 %v304
        %v517 = vunpack.c.h.b16 %v304
        %v518 = vunpack.c.l.b16 %v305
        %v519 = vunpack.c.h.b16 %v305
        %v520 = vunpack.c.l.b16 %v306
        %v521 = vunpack.c.h.b16 %v306
        %v522 = vunpack.c.l.b16 %v307
        %v523 = vunpack.c.h.b16 %v307
        %v524 = vunpack.c.l.b16 %v308
        %v525 = vunpack.c.h.b16 %v308
        %v526 = vunpack.c.l.b16 %v309
        %v527 = vunpack.c.h.b16 %v309
        %v528 = vunpack.c.l.b16 %v310
        %v529 = vunpack.c.h.b16 %v310
        %v530 = vunpack.c.l.b16 %v311
        %v531 = vunpack.c.h.b16 %v311
        %v532 = vunpack.c.l.b16 %v312
        %v533 = vunpack.c.h.b16 %v312
        %v534 = vunpack.c.l.b16 %v313
        %v535 = vunpack.c.h.b16 %v313
        %v536 = vunpack.c.l.b16 %v314
        %v537 = vunpack.c.h.b16 %v314
        %v538 = vunpack.c.l.b16 %v315
        %v539 = vunpack.c.h.b16 %v315
        %v540 = vunpack.c.l.b16 %v316
        %v541 = vunpack.c.h.b16 %v316
        %v542 = vunpack.c.l.b16 %v317
        %v543 = vunpack.c.h.b16 %v317
        %v544 = vunpack.c.l.b16 %v318
        %v545 = vunpack.c.h.b16 %v318
        %v546 = vunpack.c.l.b16 %v319
        %v547 = vunpack.c.h.b16 %v319
        %v548 = vunpack.c.l.b16 %v320
        %v549 = vunpack.c.h.b16 %v320
        %v550 = vunpack.c.l.b16 %v321
        %v551 = vunpack.c.h.b16 %v321
        %v552 = vunpack.c.l.b16 %v322
        %v553 = vunpack.c.h.b16 %v322
        %v554 = vunpack.c.l.b16 %v323
        %v555 = vunpack.c.h.b16 %v323
        %v556 = vunpack.c.l.b16 %v324
        %v557 = vunpack.c.h.b16 %v324
        %v558 = vunpack.c.l.b16 %v325
        %v559 = vunpack.c.h.b16 %v325
        %v560 = vunpack.c.l.b16 %v326
        %v561 = vunpack.c.h.b16 %v326
        %v562 = vunpack.c.l.b16 %v327
        %v563 = vunpack.c.h.b16 %v327
        %v564 = vunpack.c.l.b16 %v328
        %v565 = vunpack.c.h.b16 %v328
        %v566 = vunpack.c.l.b16 %v329
        %v567 = vunpack.c.h.b16 %v329
        %v568 = vunpack.c.l.b16 %v330
        %v569 = vunpack.c.h.b16 %v330
        %v570 = vunpack.c.l.b16 %v331
        %v571 = vunpack.c.h.b16 %v331
        %v572 = vpack.c.b16 %v432, %v412
        %v573 = vpack.c.b16 %v433, %v413
        %v574 = vpack.c.b16 %v434, %v414
        %v575 = vpack.c.b16 %v435, %v415
        %v576 = vpack.c.b16 %v436, %v416
        %v577 = vpack.c.b16 %v437, %v417
        %v578 = vpack.c.b16 %v438, %v418
        %v579 = vpack.c.b16 %v439, %v419
        %v580 = vpack.c.b16 %v440, %v420
        %v581 = vpack.c.b16 %v441, %v421
        %v582 = vpack.c.b16 %v442, %v422
        %v583 = vpack.c.b16 %v443, %v423
        %v584 = vpack.c.b16 %v444, %v424
        %v585 = vpack.c.b16 %v445, %v425
        %v586 = vpack.c.b16 %v446, %v426
        %v587 = vpack.c.b16 %v447, %v427
        %v588 = vpack.c.b16 %v448, %v428
        %v589 = vpack.c.b16 %v449, %v429
        %v590 = vpack.c.b16 %v450, %v430
        %v591 = vpack.c.b16 %v451, %v431
        %v592 = vpack.c.b16 %v472, %v452
        %v593 = vpack.c.b16 %v473, %v453
        %v594 = vpack.c.b16 %v474, %v454
        %v595 = vpack.c.b16 %v475, %v455
        %v596 = vpack.c.b16 %v476, %v456
        %v597 = vpack.c.b16 %v477, %v457
        %v598 = vpack.c.b16 %v478, %v458
        %v599 = vpack.c.b16 %v479, %v459
        %v600 = vpack.c.b16 %v480, %v460
        %v601 = vpack.c.b16 %v481, %v461
        %v602 = vpack.c.b16 %v482, %v462
        %v603 = vpack.c.b16 %v483, %v463
        %v604 = vpack.c.b16 %v484, %v464
        %v605 = vpack.c.b16 %v485, %v465
        %v606 = vpack.c.b16 %v486, %v466
        %v607 = vpack.c.b16 %v487, %v467
        %v608 = vpack.c.b16 %v488, %v468
        %v609 = vpack.c.b16 %v489, %v469
        %v610 = vpack.c.b16 %v490, %v470
        %v611 = vpack.c.b16 %v491, %v471
        %v612 = vpack.c.b16 %v512, %v492
        %v613 = vpack.c.b16 %v513, %v493
        %v614 = vpack.c.b16 %v514, %v494
        %v615 = vpack.c.b16 %v515, %v495
        %v616 = vpack.c.b16 %v516, %v496
        %v617 = vpack.c.b16 %v517, %v497
        %v618 = vpack.c.b16 %v518, %v498
        %v619 = vpack.c.b16 %v519, %v499
        %v620 = vpack.c.b16 %v520, %v500
        %v621 = vpack.c.b16 %v521, %v501
        %v622 = vpack.c.b16 %v522, %v502
        %v623 = vpack.c.b16 %v523, %v503
        %v624 = vpack.c.b16 %v524, %v504
        %v625 = vpack.c.b16 %v525, %v505
        %v626 = vpack.c.b16 %v526, %v506
        %v627 = vpack.c.b16 %v527, %v507
        %v628 = vpack.c.b16 %v528, %v508
        %v629 = vpack.c.b16 %v529, %v509
        %v630 = vpack.c.b16 %v530, %v510
        %v631 = vpack.c.b16 %v531, %v511
        %v632 = vpack.c.b16 %v552, %v532
        %v633 = vpack.c.b16 %v553, %v533
        %v634 = vpack.c.b16 %v554, %v534
        %v635 = vpack.c.b16 %v555, %v535
        %v636 = vpack.c.b16 %v556, %v536
        %v637 = vpack.c.b16 %v557, %v537
        %v638 = vpack.c.b16 %v558, %v538
        %v639 = vpack.c.b16 %v559, %v539
        %v640 = vpack.c.b16 %v560, %v540
        %v641 = vpack.c.b16 %v561, %v541
        %v642 = vpack.c.b16 %v562, %v542
        %v643 = vpack.c.b16 %v563, %v543
        %v644 = vpack.c.b16 %v564, %v544
        %v645 = vpack.c.b16 %v565, %v545
        %v646 = vpack.c.b16 %v566, %v546
        %v647 = vpack.c.b16 %v567, %v547
        %v648 = vpack.c.b16 %v568, %v548
        %v649 = vpack.c.b16 %v569, %v549
        %v650 = vpack.c.b16 %v570, %v550
        %v651 = vpack.c.b16 %v571, %v551
        %vm732 = vcmask 523264
        %v734 = vsel %vm732, %v251, 0
        %736 = vmatprep.subr.bf16.mxu0 0
        %737 = vmatpush1.bf16.msra.mxu0 0
        %738 = vmatprep.subr.bf16.mxu0 0
        %739 = vmatpush1.bf16.msra.mxu0 0
        %740 = vmatprep.subr.bf16.mxu0 0
        %741 = vmatpush1.bf16.msra.mxu0 0
        %742 = vmatprep.subr.bf16.mxu0 0
        %743 = vmatpush1.bf16.msra.mxu0 0
        %744 = vmatprep.subr.bf16.mxu0 %v633
        %745 = vmatpush1.bf16.msra.mxu0 %v632
        %746 = vmatprep.subr.bf16.mxu0 %v613
        %747 = vmatpush1.bf16.msra.mxu0 %v612
        %748 = vmatprep.subr.bf16.mxu0 %v593
        %749 = vmatpush1.bf16.msra.mxu0 %v592
        %750 = vmatprep.subr.bf16.mxu0 %v573
        %751 = vmatpush1.bf16.msra.mxu0 %v572
        %752 = vmatprep.subr.bf16.mxu0 0
        %753 = vmatpush2.bf16.msra.mxu0 0
        %754 = vmatprep.subr.bf16.mxu0 0
        %755 = vmatpush2.bf16.msra.mxu0 0
        %756 = vmatprep.subr.bf16.mxu0 0
        %757 = vmatpush2.bf16.msra.mxu0 0
        %758 = vmatprep.subr.bf16.mxu0 0
        %759 = vmatpush2.bf16.msra.mxu0 0
        %760 = vmatprep.subr.bf16.mxu0 0
        %761 = vmatpush2.bf16.msra.mxu0 0
        %762 = vmatprep.subr.bf16.mxu0 0
        %763 = vmatpush2.bf16.msra.mxu0 0
        %764 = vmatprep.subr.bf16.mxu0 0
        %765 = vmatpush2.bf16.msra.mxu0 0
        %766 = vmatprep.subr.bf16.mxu0 0
        %767 = vmatpush2.bf16.msra.mxu0 0
        %768 = vmatprep.mubr.bf16.mxu0 0
        %769 = vmatmul.mubr.bf16.gmra.mxu0 %v734
        %v770 = vpop.f32.mrf.mxu0
        %v771 = vadd.f32 0.0, %v770
        %v772 = vpop.f32.mrf.mxu0
        %v773 = vadd.f32 0.0, %v772
        %v774 = vpop.f32.mrf.mxu0
        %v775 = vpop.f32.mrf.mxu0
        %776 = vdwg.mxu0
        %777 = vmatprep.subr.bf16.mxu0 0
        %778 = vmatpush1.bf16.msra.mxu0 0
        %779 = vmatprep.subr.bf16.mxu0 0
        %780 = vmatpush1.bf16.msra.mxu0 0
        %781 = vmatprep.subr.bf16.mxu0 0
        %782 = vmatpush1.bf16.msra.mxu0 0
        %783 = vmatprep.subr.bf16.mxu0 0
        %784 = vmatpush1.bf16.msra.mxu0 0
        %785 = vmatprep.subr.bf16.mxu0 %v635
        %786 = vmatpush1.bf16.msra.mxu0 %v634
        %787 = vmatprep.subr.bf16.mxu0 %v615
        %788 = vmatpush1.bf16.msra.mxu0 %v614
        %789 = vmatprep.subr.bf16.mxu0 %v595
        %790 = vmatpush1.bf16.msra.mxu0 %v594
        %791 = vmatprep.subr.bf16.mxu0 %v575
        %792 = vmatpush1.bf16.msra.mxu0 %v574
        %793 = vmatprep.subr.bf16.mxu0 0
        %794 = vmatpush2.bf16.msra.mxu0 0
        %795 = vmatprep.subr.bf16.mxu0 0
        %796 = vmatpush2.bf16.msra.mxu0 0
        %797 = vmatprep.subr.bf16.mxu0 0
        %798 = vmatpush2.bf16.msra.mxu0 0
        %799 = vmatprep.subr.bf16.mxu0 0
        %800 = vmatpush2.bf16.msra.mxu0 0
        %801 = vmatprep.subr.bf16.mxu0 0
        %802 = vmatpush2.bf16.msra.mxu0 0
        %803 = vmatprep.subr.bf16.mxu0 0
        %804 = vmatpush2.bf16.msra.mxu0 0
        %805 = vmatprep.subr.bf16.mxu0 0
        %806 = vmatpush2.bf16.msra.mxu0 0
        %807 = vmatprep.subr.bf16.mxu0 0
        %808 = vmatpush2.bf16.msra.mxu0 0
        %809 = vmatprep.mubr.bf16.mxu0 0
        %810 = vmatmul.mubr.bf16.gmra.mxu0 %v734
        %v811 = vpop.f32.mrf.mxu0
        %v812 = vadd.f32 0.0, %v811
        %v813 = vpop.f32.mrf.mxu0
        %v814 = vadd.f32 0.0, %v813
        %v815 = vpop.f32.mrf.mxu0
        %v816 = vpop.f32.mrf.mxu0
        %817 = vdwg.mxu0
        %818 = vmatprep.subr.bf16.mxu0 0
        %819 = vmatpush1.bf16.msra.mxu0 0
        %820 = vmatprep.subr.bf16.mxu0 0
        %821 = vmatpush1.bf16.msra.mxu0 0
        %822 = vmatprep.subr.bf16.mxu0 0
        %823 = vmatpush1.bf16.msra.mxu0 0
        %824 = vmatprep.subr.bf16.mxu0 0
        %825 = vmatpush1.bf16.msra.mxu0 0
        %826 = vmatprep.subr.bf16.mxu0 %v637
        %827 = vmatpush1.bf16.msra.mxu0 %v636
        %828 = vmatprep.subr.bf16.mxu0 %v617
        %829 = vmatpush1.bf16.msra.mxu0 %v616
        %830 = vmatprep.subr.bf16.mxu0 %v597
        %831 = vmatpush1.bf16.msra.mxu0 %v596
        %832 = vmatprep.subr.bf16.mxu0 %v577
        %833 = vmatpush1.bf16.msra.mxu0 %v576
        %834 = vmatprep.subr.bf16.mxu0 0
        %835 = vmatpush2.bf16.msra.mxu0 0
        %836 = vmatprep.subr.bf16.mxu0 0
        %837 = vmatpush2.bf16.msra.mxu0 0
        %838 = vmatprep.subr.bf16.mxu0 0
        %839 = vmatpush2.bf16.msra.mxu0 0
        %840 = vmatprep.subr.bf16.mxu0 0
        %841 = vmatpush2.bf16.msra.mxu0 0
        %842 = vmatprep.subr.bf16.mxu0 0
        %843 = vmatpush2.bf16.msra.mxu0 0
        %844 = vmatprep.subr.bf16.mxu0 0
        %845 = vmatpush2.bf16.msra.mxu0 0
        %846 = vmatprep.subr.bf16.mxu0 0
        %847 = vmatpush2.bf16.msra.mxu0 0
        %848 = vmatprep.subr.bf16.mxu0 0
        %849 = vmatpush2.bf16.msra.mxu0 0
        %850 = vmatprep.mubr.bf16.mxu0 0
        %851 = vmatmul.mubr.bf16.gmra.mxu0 %v734
        %v852 = vpop.f32.mrf.mxu0
        %v853 = vadd.f32 0.0, %v852
        %v854 = vpop.f32.mrf.mxu0
        %v855 = vadd.f32 0.0, %v854
        %v856 = vpop.f32.mrf.mxu0
        %v857 = vpop.f32.mrf.mxu0
        %858 = vdwg.mxu0
        %859 = vmatprep.subr.bf16.mxu0 0
        %860 = vmatpush1.bf16.msra.mxu0 0
        %861 = vmatprep.subr.bf16.mxu0 0
        %862 = vmatpush1.bf16.msra.mxu0 0
        %863 = vmatprep.subr.bf16.mxu0 0
        %864 = vmatpush1.bf16.msra.mxu0 0
        %865 = vmatprep.subr.bf16.mxu0 0
        %866 = vmatpush1.bf16.msra.mxu0 0
        %867 = vmatprep.subr.bf16.mxu0 %v639
        %868 = vmatpush1.bf16.msra.mxu0 %v638
        %869 = vmatprep.subr.bf16.mxu0 %v619
        %870 = vmatpush1.bf16.msra.mxu0 %v618
        %871 = vmatprep.subr.bf16.mxu0 %v599
        %872 = vmatpush1.bf16.msra.mxu0 %v598
        %873 = vmatprep.subr.bf16.mxu0 %v579
        %874 = vmatpush1.bf16.msra.mxu0 %v578
        %875 = vmatprep.subr.bf16.mxu0 0
        %876 = vmatpush2.bf16.msra.mxu0 0
        %877 = vmatprep.subr.bf16.mxu0 0
        %878 = vmatpush2.bf16.msra.mxu0 0
        %879 = vmatprep.subr.bf16.mxu0 0
        %880 = vmatpush2.bf16.msra.mxu0 0
        %881 = vmatprep.subr.bf16.mxu0 0
        %882 = vmatpush2.bf16.msra.mxu0 0
        %883 = vmatprep.subr.bf16.mxu0 0
        %884 = vmatpush2.bf16.msra.mxu0 0
        %885 = vmatprep.subr.bf16.mxu0 0
        %886 = vmatpush2.bf16.msra.mxu0 0
        %887 = vmatprep.subr.bf16.mxu0 0
        %888 = vmatpush2.bf16.msra.mxu0 0
        %889 = vmatprep.subr.bf16.mxu0 0
        %890 = vmatpush2.bf16.msra.mxu0 0
        %891 = vmatprep.mubr.bf16.mxu0 0
        %892 = vmatmul.mubr.bf16.gmra.mxu0 %v734
        %v893 = vpop.f32.mrf.mxu0
        %v894 = vadd.f32 0.0, %v893
        %v895 = vpop.f32.mrf.mxu0
        %v896 = vadd.f32 0.0, %v895
        %v897 = vpop.f32.mrf.mxu0
        %v898 = vpop.f32.mrf.mxu0
        %899 = vdwg.mxu0
        %900 = vmatprep.subr.bf16.mxu0 0
        %901 = vmatpush1.bf16.msra.mxu0 0
        %902 = vmatprep.subr.bf16.mxu0 0
        %903 = vmatpush1.bf16.msra.mxu0 0
        %904 = vmatprep.subr.bf16.mxu0 0
        %905 = vmatpush1.bf16.msra.mxu0 0
        %906 = vmatprep.subr.bf16.mxu0 0
        %907 = vmatpush1.bf16.msra.mxu0 0
        %908 = vmatprep.subr.bf16.mxu0 %v641
        %909 = vmatpush1.bf16.msra.mxu0 %v640
        %910 = vmatprep.subr.bf16.mxu0 %v621
        %911 = vmatpush1.bf16.msra.mxu0 %v620
        %912 = vmatprep.subr.bf16.mxu0 %v601
        %913 = vmatpush1.bf16.msra.mxu0 %v600
        %914 = vmatprep.subr.bf16.mxu0 %v581
        %915 = vmatpush1.bf16.msra.mxu0 %v580
        %916 = vmatprep.subr.bf16.mxu0 0
        %917 = vmatpush2.bf16.msra.mxu0 0
        %918 = vmatprep.subr.bf16.mxu0 0
        %919 = vmatpush2.bf16.msra.mxu0 0
        %920 = vmatprep.subr.bf16.mxu0 0
        %921 = vmatpush2.bf16.msra.mxu0 0
        %922 = vmatprep.subr.bf16.mxu0 0
        %923 = vmatpush2.bf16.msra.mxu0 0
        %924 = vmatprep.subr.bf16.mxu0 0
        %925 = vmatpush2.bf16.msra.mxu0 0
        %926 = vmatprep.subr.bf16.mxu0 0
        %927 = vmatpush2.bf16.msra.mxu0 0
        %928 = vmatprep.subr.bf16.mxu0 0
        %929 = vmatpush2.bf16.msra.mxu0 0
        %930 = vmatprep.subr.bf16.mxu0 0
        %931 = vmatpush2.bf16.msra.mxu0 0
        %932 = vmatprep.mubr.bf16.mxu0 0
        %933 = vmatmul.mubr.bf16.gmra.mxu0 %v734
        %v934 = vpop.f32.mrf.mxu0
        %v935 = vadd.f32 0.0, %v934
        %v936 = vpop.f32.mrf.mxu0
        %v937 = vadd.f32 0.0, %v936
        %v938 = vpop.f32.mrf.mxu0
        %v939 = vpop.f32.mrf.mxu0
        %940 = vdwg.mxu0
        %941 = vmatprep.subr.bf16.mxu0 0
        %942 = vmatpush1.bf16.msra.mxu0 0
        %943 = vmatprep.subr.bf16.mxu0 0
        %944 = vmatpush1.bf16.msra.mxu0 0
        %945 = vmatprep.subr.bf16.mxu0 0
        %946 = vmatpush1.bf16.msra.mxu0 0
        %947 = vmatprep.subr.bf16.mxu0 0
        %948 = vmatpush1.bf16.msra.mxu0 0
        %949 = vmatprep.subr.bf16.mxu0 %v643
        %950 = vmatpush1.bf16.msra.mxu0 %v642
        %951 = vmatprep.subr.bf16.mxu0 %v623
        %952 = vmatpush1.bf16.msra.mxu0 %v622
        %953 = vmatprep.subr.bf16.mxu0 %v603
        %954 = vmatpush1.bf16.msra.mxu0 %v602
        %955 = vmatprep.subr.bf16.mxu0 %v583
        %956 = vmatpush1.bf16.msra.mxu0 %v582
        %957 = vmatprep.subr.bf16.mxu0 0
        %958 = vmatpush2.bf16.msra.mxu0 0
        %959 = vmatprep.subr.bf16.mxu0 0
        %960 = vmatpush2.bf16.msra.mxu0 0
        %961 = vmatprep.subr.bf16.mxu0 0
        %962 = vmatpush2.bf16.msra.mxu0 0
        %963 = vmatprep.subr.bf16.mxu0 0
        %964 = vmatpush2.bf16.msra.mxu0 0
        %965 = vmatprep.subr.bf16.mxu0 0
        %966 = vmatpush2.bf16.msra.mxu0 0
        %967 = vmatprep.subr.bf16.mxu0 0
        %968 = vmatpush2.bf16.msra.mxu0 0
        %969 = vmatprep.subr.bf16.mxu0 0
        %970 = vmatpush2.bf16.msra.mxu0 0
        %971 = vmatprep.subr.bf16.mxu0 0
        %972 = vmatpush2.bf16.msra.mxu0 0
        %973 = vmatprep.mubr.bf16.mxu0 0
        %974 = vmatmul.mubr.bf16.gmra.mxu0 %v734
        %v975 = vpop.f32.mrf.mxu0
        %v976 = vadd.f32 0.0, %v975
        %v977 = vpop.f32.mrf.mxu0
        %v978 = vadd.f32 0.0, %v977
        %v979 = vpop.f32.mrf.mxu0
        %v980 = vpop.f32.mrf.mxu0
        %981 = vdwg.mxu0
        %982 = vmatprep.subr.bf16.mxu0 0
        %983 = vmatpush1.bf16.msra.mxu0 0
        %984 = vmatprep.subr.bf16.mxu0 0
        %985 = vmatpush1.bf16.msra.mxu0 0
        %986 = vmatprep.subr.bf16.mxu0 0
        %987 = vmatpush1.bf16.msra.mxu0 0
        %988 = vmatprep.subr.bf16.mxu0 0
        %989 = vmatpush1.bf16.msra.mxu0 0
        %990 = vmatprep.subr.bf16.mxu0 %v645
        %991 = vmatpush1.bf16.msra.mxu0 %v644
        %992 = vmatprep.subr.bf16.mxu0 %v625
        %993 = vmatpush1.bf16.msra.mxu0 %v624
        %994 = vmatprep.subr.bf16.mxu0 %v605
        %995 = vmatpush1.bf16.msra.mxu0 %v604
        %996 = vmatprep.subr.bf16.mxu0 %v585
        %997 = vmatpush1.bf16.msra.mxu0 %v584
        %998 = vmatprep.subr.bf16.mxu0 0
        %999 = vmatpush2.bf16.msra.mxu0 0
        %1000 = vmatprep.subr.bf16.mxu0 0
        %1001 = vmatpush2.bf16.msra.mxu0 0
        %1002 = vmatprep.subr.bf16.mxu0 0
        %1003 = vmatpush2.bf16.msra.mxu0 0
        %1004 = vmatprep.subr.bf16.mxu0 0
        %1005 = vmatpush2.bf16.msra.mxu0 0
        %1006 = vmatprep.subr.bf16.mxu0 0
        %1007 = vmatpush2.bf16.msra.mxu0 0
        %1008 = vmatprep.subr.bf16.mxu0 0
        %1009 = vmatpush2.bf16.msra.mxu0 0
        %1010 = vmatprep.subr.bf16.mxu0 0
        %1011 = vmatpush2.bf16.msra.mxu0 0
        %1012 = vmatprep.subr.bf16.mxu0 0
        %1013 = vmatpush2.bf16.msra.mxu0 0
        %1014 = vmatprep.mubr.bf16.mxu0 0
        %1015 = vmatmul.mubr.bf16.gmra.mxu0 %v734
        %v1016 = vpop.f32.mrf.mxu0
        %v1017 = vadd.f32 0.0, %v1016
        %v1018 = vpop.f32.mrf.mxu0
        %v1019 = vadd.f32 0.0, %v1018
        %v1020 = vpop.f32.mrf.mxu0
        %v1021 = vpop.f32.mrf.mxu0
        %1022 = vdwg.mxu0
        %1023 = vmatprep.subr.bf16.mxu0 0
        %1024 = vmatpush1.bf16.msra.mxu0 0
        %1025 = vmatprep.subr.bf16.mxu0 0
        %1026 = vmatpush1.bf16.msra.mxu0 0
        %1027 = vmatprep.subr.bf16.mxu0 0
        %1028 = vmatpush1.bf16.msra.mxu0 0
        %1029 = vmatprep.subr.bf16.mxu0 0
        %1030 = vmatpush1.bf16.msra.mxu0 0
        %1031 = vmatprep.subr.bf16.mxu0 %v647
        %1032 = vmatpush1.bf16.msra.mxu0 %v646
        %1033 = vmatprep.subr.bf16.mxu0 %v627
        %1034 = vmatpush1.bf16.msra.mxu0 %v626
        %1035 = vmatprep.subr.bf16.mxu0 %v607
        %1036 = vmatpush1.bf16.msra.mxu0 %v606
        %1037 = vmatprep.subr.bf16.mxu0 %v587
        %1038 = vmatpush1.bf16.msra.mxu0 %v586
        %1039 = vmatprep.subr.bf16.mxu0 0
        %1040 = vmatpush2.bf16.msra.mxu0 0
        %1041 = vmatprep.subr.bf16.mxu0 0
        %1042 = vmatpush2.bf16.msra.mxu0 0
        %1043 = vmatprep.subr.bf16.mxu0 0
        %1044 = vmatpush2.bf16.msra.mxu0 0
        %1045 = vmatprep.subr.bf16.mxu0 0
        %1046 = vmatpush2.bf16.msra.mxu0 0
        %1047 = vmatprep.subr.bf16.mxu0 0
        %1048 = vmatpush2.bf16.msra.mxu0 0
        %1049 = vmatprep.subr.bf16.mxu0 0
        %1050 = vmatpush2.bf16.msra.mxu0 0
        %1051 = vmatprep.subr.bf16.mxu0 0
        %1052 = vmatpush2.bf16.msra.mxu0 0
        %1053 = vmatprep.subr.bf16.mxu0 0
        %1054 = vmatpush2.bf16.msra.mxu0 0
        %1055 = vmatprep.mubr.bf16.mxu0 0
        %1056 = vmatmul.mubr.bf16.gmra.mxu0 %v734
        %v1057 = vpop.f32.mrf.mxu0
        %v1058 = vadd.f32 0.0, %v1057
        %v1059 = vpop.f32.mrf.mxu0
        %v1060 = vadd.f32 0.0, %v1059
        %v1061 = vpop.f32.mrf.mxu0
        %v1062 = vpop.f32.mrf.mxu0
        %1063 = vdwg.mxu0
        %1064 = vmatprep.subr.bf16.mxu0 0
        %1065 = vmatpush1.bf16.msra.mxu0 0
        %1066 = vmatprep.subr.bf16.mxu0 0
        %1067 = vmatpush1.bf16.msra.mxu0 0
        %1068 = vmatprep.subr.bf16.mxu0 0
        %1069 = vmatpush1.bf16.msra.mxu0 0
        %1070 = vmatprep.subr.bf16.mxu0 0
        %1071 = vmatpush1.bf16.msra.mxu0 0
        %1072 = vmatprep.subr.bf16.mxu0 %v649
        %1073 = vmatpush1.bf16.msra.mxu0 %v648
        %1074 = vmatprep.subr.bf16.mxu0 %v629
        %1075 = vmatpush1.bf16.msra.mxu0 %v628
        %1076 = vmatprep.subr.bf16.mxu0 %v609
        %1077 = vmatpush1.bf16.msra.mxu0 %v608
        %1078 = vmatprep.subr.bf16.mxu0 %v589
        %1079 = vmatpush1.bf16.msra.mxu0 %v588
        %1080 = vmatprep.subr.bf16.mxu0 0
        %1081 = vmatpush2.bf16.msra.mxu0 0
        %1082 = vmatprep.subr.bf16.mxu0 0
        %1083 = vmatpush2.bf16.msra.mxu0 0
        %1084 = vmatprep.subr.bf16.mxu0 0
        %1085 = vmatpush2.bf16.msra.mxu0 0
        %1086 = vmatprep.subr.bf16.mxu0 0
        %1087 = vmatpush2.bf16.msra.mxu0 0
        %1088 = vmatprep.subr.bf16.mxu0 0
        %1089 = vmatpush2.bf16.msra.mxu0 0
        %1090 = vmatprep.subr.bf16.mxu0 0
        %1091 = vmatpush2.bf16.msra.mxu0 0
        %1092 = vmatprep.subr.bf16.mxu0 0
        %1093 = vmatpush2.bf16.msra.mxu0 0
        %1094 = vmatprep.subr.bf16.mxu0 0
        %1095 = vmatpush2.bf16.msra.mxu0 0
        %1096 = vmatprep.mubr.bf16.mxu0 0
        %1097 = vmatmul.mubr.bf16.gmra.mxu0 %v734
        %v1098 = vpop.f32.mrf.mxu0
        %v1099 = vadd.f32 0.0, %v1098
        %v1100 = vpop.f32.mrf.mxu0
        %v1101 = vadd.f32 0.0, %v1100
        %v1102 = vpop.f32.mrf.mxu0
        %v1103 = vpop.f32.mrf.mxu0
        %1104 = vdwg.mxu0
        %1105 = vmatprep.subr.bf16.mxu0 0
        %1106 = vmatpush1.bf16.msra.mxu0 0
        %1107 = vmatprep.subr.bf16.mxu0 0
        %1108 = vmatpush1.bf16.msra.mxu0 0
        %1109 = vmatprep.subr.bf16.mxu0 0
        %1110 = vmatpush1.bf16.msra.mxu0 0
        %1111 = vmatprep.subr.bf16.mxu0 0
        %1112 = vmatpush1.bf16.msra.mxu0 0
        %1113 = vmatprep.subr.bf16.mxu0 %v651
        %1114 = vmatpush1.bf16.msra.mxu0 %v650
        %1115 = vmatprep.subr.bf16.mxu0 %v631
        %1116 = vmatpush1.bf16.msra.mxu0 %v630
        %1117 = vmatprep.subr.bf16.mxu0 %v611
        %1118 = vmatpush1.bf16.msra.mxu0 %v610
        %1119 = vmatprep.subr.bf16.mxu0 %v591
        %1120 = vmatpush1.bf16.msra.mxu0 %v590
        %1121 = vmatprep.subr.bf16.mxu0 0
        %1122 = vmatpush2.bf16.msra.mxu0 0
        %1123 = vmatprep.subr.bf16.mxu0 0
        %1124 = vmatpush2.bf16.msra.mxu0 0
        %1125 = vmatprep.subr.bf16.mxu0 0
        %1126 = vmatpush2.bf16.msra.mxu0 0
        %1127 = vmatprep.subr.bf16.mxu0 0
        %1128 = vmatpush2.bf16.msra.mxu0 0
        %1129 = vmatprep.subr.bf16.mxu0 0
        %1130 = vmatpush2.bf16.msra.mxu0 0
        %1131 = vmatprep.subr.bf16.mxu0 0
        %1132 = vmatpush2.bf16.msra.mxu0 0
        %1133 = vmatprep.subr.bf16.mxu0 0
        %1134 = vmatpush2.bf16.msra.mxu0 0
        %1135 = vmatprep.subr.bf16.mxu0 0
        %1136 = vmatpush2.bf16.msra.mxu0 0
        %1137 = vmatprep.mubr.bf16.mxu0 0
        %1138 = vmatmul.mubr.bf16.gmra.mxu0 %v734
        %v1139 = vpop.f32.mrf.mxu0
        %v1140 = vadd.f32 0.0, %v1139
        %v1141 = vpop.f32.mrf.mxu0
        %v1142 = vadd.f32 0.0, %v1141
        %v1143 = vpop.f32.mrf.mxu0
        %v1144 = vpop.f32.mrf.mxu0
        %1145 = vdwg.mxu0
        %v1146 = vld [vmem:[#allocation2] sm:$0xff]
        %v1147 = vld [vmem:[#allocation2 + $0x8] sm:$0xff]
        %v1148 = vld [vmem:[#allocation2 + $0x10] sm:$0xff]
        %v1149 = vld [vmem:[#allocation2 + $0x18] sm:$0xff]
        %v1150 = vld [vmem:[#allocation2 + $0x20] sm:$0xff]
        %v1151 = vld [vmem:[#allocation2 + $0x28] sm:$0xff]
        %v1152 = vld [vmem:[#allocation2 + $0x30] sm:$0xff]
        %v1153 = vld [vmem:[#allocation2 + $0x38] sm:$0xff]
        %v1154 = vld [vmem:[#allocation2 + $0x40] sm:$0xff]
        %v1155 = vld [vmem:[#allocation2 + $0x48] sm:$0xff]
        %v1156 = vld [vmem:[#allocation2 + $0x50] sm:$0xff]
        %v1157 = vld [vmem:[#allocation2 + $0x58] sm:$0xff]
        %v1158 = vld [vmem:[#allocation2 + $0x60] sm:$0xff]
        %v1159 = vld [vmem:[#allocation2 + $0x68] sm:$0xff]
        %v1160 = vld [vmem:[#allocation2 + $0x70] sm:$0xff]
        %v1161 = vld [vmem:[#allocation2 + $0x78] sm:$0xff]
        %v1162 = vld [vmem:[#allocation2 + $0x80] sm:$0xff]
        %v1163 = vld [vmem:[#allocation2 + $0x88] sm:$0xff]
        %v1164 = vld [vmem:[#allocation2 + $0x90] sm:$0xff]
        %v1165 = vld [vmem:[#allocation2 + $0x98] sm:$0xff]
        %v1166 = vadd.f32 %v1146, %v771
        %v1167 = vadd.f32 %v1147, %v773
        %v1168 = vadd.f32 %v1148, %v812
        %v1169 = vadd.f32 %v1149, %v814
        %v1170 = vadd.f32 %v1150, %v853
        %v1171 = vadd.f32 %v1151, %v855
        %v1172 = vadd.f32 %v1152, %v894
        %v1173 = vadd.f32 %v1153, %v896
        %v1174 = vadd.f32 %v1154, %v935
        %v1175 = vadd.f32 %v1155, %v937
        %v1176 = vadd.f32 %v1156, %v976
        %v1177 = vadd.f32 %v1157, %v978
        %v1178 = vadd.f32 %v1158, %v1017
        %v1179 = vadd.f32 %v1159, %v1019
        %v1180 = vadd.f32 %v1160, %v1058
        %v1181 = vadd.f32 %v1161, %v1060
        %v1182 = vadd.f32 %v1162, %v1099
        %v1183 = vadd.f32 %v1163, %v1101
        %v1184 = vadd.f32 %v1164, %v1140
        %v1185 = vadd.f32 %v1165, %v1142
        %1186 = vst [vmem:[#allocation2] sm:$0xff] %v1166
        %1187 = vst [vmem:[#allocation2 + $0x8] sm:$0xff] %v1167
        %1188 = vst [vmem:[#allocation2 + $0x10] sm:$0xff] %v1168
        %1189 = vst [vmem:[#allocation2 + $0x18] sm:$0xff] %v1169
        %1190 = vst [vmem:[#allocation2 + $0x20] sm:$0xff] %v1170
        %1191 = vst [vmem:[#allocation2 + $0x28] sm:$0xff] %v1171
        %1192 = vst [vmem:[#allocation2 + $0x30] sm:$0xff] %v1172
        %1193 = vst [vmem:[#allocation2 + $0x38] sm:$0xff] %v1173
        %1194 = vst [vmem:[#allocation2 + $0x40] sm:$0xff] %v1174
        %1195 = vst [vmem:[#allocation2 + $0x48] sm:$0xff] %v1175
        %1196 = vst [vmem:[#allocation2 + $0x50] sm:$0xff] %v1176
        %1197 = vst [vmem:[#allocation2 + $0x58] sm:$0xff] %v1177
        %1198 = vst [vmem:[#allocation2 + $0x60] sm:$0xff] %v1178
        %1199 = vst [vmem:[#allocation2 + $0x68] sm:$0xff] %v1179
        %1200 = vst [vmem:[#allocation2 + $0x70] sm:$0xff] %v1180
        %1201 = vst [vmem:[#allocation2 + $0x78] sm:$0xff] %v1181
        %1202 = vst [vmem:[#allocation2 + $0x80] sm:$0xff] %v1182
        %1203 = vst [vmem:[#allocation2 + $0x88] sm:$0xff] %v1183
        %1204 = vst [vmem:[#allocation2 + $0x90] sm:$0xff] %v1184
        %1205 = vst [vmem:[#allocation2 + $0x98] sm:$0xff] %v1185
        %p1206 = scmp.eq.s32.totalorder %s28, 1
        %p1207 = pnand %p1206, %p226
        %p1208 = pneg %p1207
        // Predicated region
        $region41: #{tpu_custom_call.1} parent=27 // pred_check
          _
        $region42: #{tpu_custom_call.1} parent=27 // pred_check_branch
          %1210 = sbr.rel (%p1207) target = $region44
        $region43: #{tpu_custom_call.1} parent=27 // pred_region
          %v1211 = vld [vmem:[#allocation2] sm:$0xff]
          %v1212 = vld [vmem:[#allocation2 + $0x8] sm:$0xff]
          %v1213 = vld [vmem:[#allocation2 + $0x10] sm:$0xff]
          %v1214 = vld [vmem:[#allocation2 + $0x18] sm:$0xff]
          %v1215 = vld [vmem:[#allocation2 + $0x20] sm:$0xff]
          %v1216 = vld [vmem:[#allocation2 + $0x28] sm:$0xff]
          %v1217 = vld [vmem:[#allocation2 + $0x30] sm:$0xff]
          %v1218 = vld [vmem:[#allocation2 + $0x38] sm:$0xff]
          %v1219 = vld [vmem:[#allocation2 + $0x40] sm:$0xff]
          %v1220 = vld [vmem:[#allocation2 + $0x48] sm:$0xff]
          %v1221 = vld [vmem:[#allocation2 + $0x50] sm:$0xff]
          %v1222 = vld [vmem:[#allocation2 + $0x58] sm:$0xff]
          %v1223 = vld [vmem:[#allocation2 + $0x60] sm:$0xff]
          %v1224 = vld [vmem:[#allocation2 + $0x68] sm:$0xff]
          %v1225 = vld [vmem:[#allocation2 + $0x70] sm:$0xff]
          %v1226 = vld [vmem:[#allocation2 + $0x78] sm:$0xff]
          %v1227 = vld [vmem:[#allocation2 + $0x80] sm:$0xff]
          %v1228 = vld [vmem:[#allocation2 + $0x88] sm:$0xff]
          %v1229 = vld [vmem:[#allocation2 + $0x90] sm:$0xff]
          %v1230 = vld [vmem:[#allocation2 + $0x98] sm:$0xff]
          %v1231 = vadd.f32 %v1211, %v1212
          %v1232 = vadd.f32 %v1231, %v1213
          %v1233 = vadd.f32 %v1232, %v1214
          %v1234 = vadd.f32 %v1233, %v1215
          %v1235 = vadd.f32 %v1234, %v1216
          %v1236 = vadd.f32 %v1235, %v1217
          %v1237 = vadd.f32 %v1236, %v1218
          %v1238 = vadd.f32 %v1237, %v1219
          %v1239 = vadd.f32 %v1238, %v1220
          %v1240 = vadd.f32 %v1239, %v1221
          %v1241 = vadd.f32 %v1240, %v1222
          %v1242 = vadd.f32 %v1241, %v1223
          %v1243 = vadd.f32 %v1242, %v1224
          %v1244 = vadd.f32 %v1243, %v1225
          %v1245 = vadd.f32 %v1244, %v1226
          %v1246 = vadd.f32 %v1245, %v1227
          %v1247 = vadd.f32 %v1246, %v1228
          %v1248 = vadd.f32 %v1247, %v1229
          %v1249 = vadd.f32 %v1248, %v1230
          %v1250 = vrot.slane %v1249, 4
          %v1251 = vadd.f32 %v1249, %v1250
          %v1252 = vrot.slane %v1251, 2
          %v1253 = vadd.f32 %v1251, %v1252
          %v1254 = vrot.slane %v1253, 1
          %v1255 = vadd.f32 %v1253, %v1254
          %v1256 = vmul.f32 %v1255, 0.003125
          %1257 = vst [vmem:[%s223] sm:$0x1] %v1256
        $region44: #{tpu_custom_call.1} parent=27 // pred_fallthru
          _
        %s1258 = sand.u32 %s105, 1
        %s1259 = scalar_lea.sflag [#allocation5], %s1258
        %s1260 = sand.u32 %s105, 1
        %s1261 = scalar_lea.vmem [#allocation8], %s1260
        // Predicated region
        $region45: #{tpu_custom_call.1} parent=27 // pred_check
          %p1262 = pneg %p115
        $region46: #{tpu_custom_call.1} parent=27 // pred_check_branch
          %1264 = sbr.rel (%p1262) target = $region48
        $region47: #{tpu_custom_call.1} parent=27 // pred_region
          %s1266 = ssub.s32 16, 16
          %1267 = vsyncadd %s1259, %s1266
          %s1268 = smul.addr %s27, 16
          %s1269 = scalar_lea.hbm %s2, %s1268
          %s1271 = sshll.u32 %s1261, 4
          %s1272 = int_to_ptr.vmem [resolvable:$true] %s1271
          %1274 = dma.vmem_to_hbm [thread:$0]  %s1272, 16, %s1269, %s1259
        $region48: #{tpu_custom_call.1} parent=27 // pred_fallthru
          _
      $region28: #{tpu_custom_call.1} parent=5 // pred_fallthru
        _
      %p1275 = scmp.le.s32.totalorder 2, %s17
      // Predicated region
      $region49: #{tpu_custom_call.1} parent=5 // pred_check
        %p1276 = pneg %p1275
      $region50: #{tpu_custom_call.1} parent=5 // pred_check_branch
        %1278 = sbr.rel (%p1276) target = $region52
      $region51: #{tpu_custom_call.1} parent=5 // pred_region
        %s1279 = ssub.s32 %s17, 2
        // Predicated region
        $region53: #{tpu_custom_call.1} parent=51 // pred_check
          %p1280 = pneg %p121
        $region54: #{tpu_custom_call.1} parent=51 // pred_check_branch
          %1282 = sbr.rel (%p1280) target = $region56
        $region55: #{tpu_custom_call.1} parent=51 // pred_region
          %s1283 = sand.u32 %s106, 1
          %s1284 = scalar_lea.sflag [#allocation5], %s1283
          %s1285 = sand.u32 %s106, 1
          %s1286 = scalar_lea.vmem [#allocation8], %s1285
          %1287 = dma.done %s1284, 16
        $region56: #{tpu_custom_call.1} parent=51 // pred_fallthru
          _
      $region52: #{tpu_custom_call.1} parent=5 // pred_fallthru
        _
    $region6: #{tpu_custom_call.1} parent=1 // loop_footer
      %s21 = sadd.s32 1, %s17
    $region7: #{tpu_custom_call.1} parent=1 // loop_footer_branch
      %16 = sbr.rel target = $region3
    $region8: #{tpu_custom_call.1} parent=1 // loop_exit
      _
    %1288 = vsyncpa [#allocation4], 1
    %s1289 = scalar_lea.sflag [#allocation4], 1
    %1290 = vsyncpa %s1289, 1
    %1291 = vsyncpa [#allocation7], 1
    %s1292 = scalar_lea.sflag [#allocation7], 1
    %1293 = vsyncpa %s1292, 1
    %1294 = vsyncpa [#allocation5], 1
    %s1295 = scalar_lea.sflag [#allocation5], 1
    %1296 = vsyncpa %s1295, 1

</llo_original>
